<compile_context>
chip_gen: v6e
topology: v6e:2x2x1
jax: 0.10.0
libtpu: 0.0.40
codegen_flags: <defaults>
</compile_context>

<pallas_src>
import jax
import jax.numpy as jnp
from jax import lax
from jax.experimental import pallas as pl
from jax.experimental.pallas import tpu as pltpu

OUT_PAD = 8  # pad the 2-wide output to a full 8-sublane block


def _round_up(n, m):
    return ((n + m - 1) // m) * m


def _linear_kernel(x_ref, w_ref, b_ref, o_ref):
    # x_ref : (tm, F)         -- batch tile (batch on sublanes, F on lanes)
    # w_ref : (OUT_PAD, F)    -- padded weight, OUT on sublanes, F on lanes
    # b_ref : (OUT_PAD, 1)    -- padded bias (per-OUT, broadcast along lanes)
    # o_ref : (OUT_PAD, tm)   -- transposed output tile, batch on lanes
    acc = lax.dot_general(
        w_ref[...], x_ref[...],
        dimension_numbers=(((1,), (1,)), ((), ())),  # contract F with F
        preferred_element_type=jnp.float32)          # (OUT_PAD, tm)
    o_ref[...] = (acc + b_ref[...]).astype(o_ref.dtype)


def pad_params(weight, bias):
    """Pad (OUT, F) weight / (OUT,) bias to the 8-sublane kernel layout.

    Call once at parameter-init time; padded rows/entries are zero so results
    sliced back to OUT are exact.
    """
    out, f = weight.shape
    w_pad = jnp.zeros((OUT_PAD, f), weight.dtype).at[:out, :].set(weight)
    b_pad = jnp.zeros((OUT_PAD, 1), bias.dtype).at[:out, 0].set(bias)
    return w_pad, b_pad


def _choose_tile(B, tm):
    """Pick the batch tile (lane dim of the output block) and grid size."""
    if B <= 128:
        # Single block equal to the full array dims (satisfies the (8,128)
        # rule via the "equals full dim" escape hatch).
        return B, 1
    # Batch sits on output lanes -> tile must be a multiple of 128.
    tm = max(128, (min(tm, B) // 128) * 128)
    # Keep >=4 grid steps when possible so v7x's 2 TensorCores both get work
    # ("parallel" axis only shards across cores with >=2 steps).
    tm = min(tm, max(128, _round_up(pl.cdiv(B, 4), 128)))
    return tm, pl.cdiv(B, tm)


def attention_forward(x, w_pad, b_pad, *, out_features=2, tm=2048):
    """x: (B, F) f32; w_pad: (OUT_PAD, F); b_pad: (OUT_PAD, 1). Returns (B, OUT)."""
    B, F = x.shape
    tm, grid_b = _choose_tile(B, tm)

    flops = 2 * B * F * OUT_PAD
    bytes_accessed = 4 * (B * F + OUT_PAD * F + OUT_PAD + OUT_PAD * B)

    # Transposed padded output: (OUT_PAD, B) — lane-dense stores, 16x less
    # writeback than padding OUT to 128 lanes.
    out_padded = pl.pallas_call(
        _linear_kernel,
        out_shape=jax.ShapeDtypeStruct((OUT_PAD, B), x.dtype),
        grid_spec=pl.GridSpec(
            grid=(grid_b,),
            in_specs=[
                pl.BlockSpec((tm, F), lambda i: (i, 0)),        # x batch tile
                pl.BlockSpec((OUT_PAD, F), lambda i: (0, 0)),   # padded weight
                pl.BlockSpec((OUT_PAD, 1), lambda i: (0, 0)),   # padded bias
            ],
            out_specs=pl.BlockSpec((OUT_PAD, tm), lambda i: (0, i)),
        ),
        compiler_params=pltpu.CompilerParams(
            dimension_semantics=("parallel",),
            vmem_limit_bytes=32 * 1024 * 1024),
        cost_estimate=pl.CostEstimate(
            flops=flops, transcendentals=0, bytes_accessed=bytes_accessed),
    )(x, w_pad, b_pad)

    # Trivial (OUT, B) slice + transpose back to the module's (B, OUT) layout.
    # TODO(synk): at B=8/F=32 this whole linear is best fused into the
    # surrounding graph (plain x @ W.T + b) instead of a custom call.
    return out_padded[:out_features, :].T


if __name__ == "__main__":
    key = jax.random.PRNGKey(0)
    k_x, k_w, k_b, k_x2 = jax.random.split(key, 4)

    batch = 8
    num_inputs = 32
    out_features = 2  # fixed by the module: nn.Linear(num_inputs, 2)

    # Deterministic synthetic parameters (PyTorch-style uniform init bound).
    bound = 1.0 / jnp.sqrt(num_inputs)
    weight = jax.random.uniform(k_w, (out_features, num_inputs),
                                jnp.float32, -bound, bound)
    bias = jax.random.uniform(k_b, (out_features,), jnp.float32, -bound, bound)

    # Pad once at init time (hoisted out of the per-call path).
    w_pad, b_pad = pad_params(weight, bias)

    # --- shipped-size check: B=8 (single full-array block) ------------------
    x = jax.random.normal(k_x, (batch, num_inputs), jnp.float32)
    out = attention_forward(x, w_pad, b_pad, out_features=out_features)
    jax.block_until_ready(out)
    ref = x @ weight.T + bias
    assert out.shape == (batch, out_features)
    assert jnp.allclose(out, ref, atol=1e-5, rtol=1e-5)

    # --- multi-step-grid check: B=384 -> tm=128, grid=3 (exercises tiling) --
    x2 = jax.random.normal(k_x2, (384, num_inputs), jnp.float32)
    out2 = attention_forward(x2, w_pad, b_pad, out_features=out_features)
    jax.block_until_ready(out2)
    ref2 = x2 @ weight.T + bias
    assert out2.shape == (384, out_features)
    assert jnp.allclose(out2, ref2, atol=1e-5, rtol=1e-5)

    print("KERNEL_OK")
</pallas_src>

<mosaic_0001>
module attributes {stable_mosaic.version = 11 : i64} {
  func.func @_linear_kernel(%arg0: i32, %arg1: memref<8x32xf32, #tpu.memory_space<vmem>>, %arg2: memref<8x32xf32, #tpu.memory_space<vmem>>, %arg3: memref<8x1xf32, #tpu.memory_space<vmem>>, %arg4: memref<8x8xf32, #tpu.memory_space<vmem>>) attributes {dimension_semantics = [#tpu.dimension_semantics<parallel>], iteration_bounds = array<i64: 1>, scalar_prefetch = 0 : i64, scratch_operands = 0 : i64, tpu.core_type = #tpu.core_type<tc>, window_params = [{transform_indices = @transform_0, window_bounds = array<i64: 8, 32>}, {pipeline_mode = #tpu.pipeline_mode<synchronous>, transform_indices = @transform_1, window_bounds = array<i64: 8, 32>}, {pipeline_mode = #tpu.pipeline_mode<synchronous>, transform_indices = @transform_2, window_bounds = array<i64: 8, 1>}, {transform_indices = @transform_3, window_bounds = array<i64: 8, 8>}]} {
    %c0 = arith.constant 0 : index
    %c0_0 = arith.constant 0 : index
    %0 = vector.load %arg2[%c0, %c0_0] : memref<8x32xf32, #tpu.memory_space<vmem>>, vector<8x32xf32>
    %c0_1 = arith.constant 0 : index
    %c0_2 = arith.constant 0 : index
    %1 = vector.load %arg1[%c0_1, %c0_2] : memref<8x32xf32, #tpu.memory_space<vmem>>, vector<8x32xf32>
    %cst = arith.constant dense<0.000000e+00> : vector<8x8xf32>
    %2 = tpu.matmul %0, %1, %cst {dimension_numbers = #tpu.dot_dimension_numbers<[1], [1], [0], [0], [0, 0, 1, 0], [], []>} : vector<8x32xf32>, vector<8x32xf32>, vector<8x8xf32> -> vector<8x8xf32>
    %c0_3 = arith.constant 0 : index
    %c0_4 = arith.constant 0 : index
    %3 = vector.load %arg3[%c0_3, %c0_4] : memref<8x1xf32, #tpu.memory_space<vmem>>, vector<8x1xf32>
    %4 = vector.broadcast %3 : vector<8x1xf32> to vector<8x8xf32>
    %5 = arith.addf %2, %4 : vector<8x8xf32>
    %c0_5 = arith.constant 0 : index
    %c0_6 = arith.constant 0 : index
    %6 = vector.load %arg4[%c0_5, %c0_6] : memref<8x8xf32, #tpu.memory_space<vmem>>, vector<8x8xf32>
    tpu.vector_store %arg4[%c0_5, %c0_6], %5 {strides = array<i32>} : memref<8x8xf32, #tpu.memory_space<vmem>>, vector<8x8xf32>,
    return
  }
  func.func @transform_0(%arg0: i32) -> (i32, i32) {
    %c0_i32 = arith.constant 0 : i32
    %c0_i32_0 = arith.constant 0 : i32
    return %arg0, %c0_i32 : i32, i32
  }
  func.func @transform_1(%arg0: i32) -> (i32, i32) {
    %c0_i32 = arith.constant 0 : i32
    %c0_i32_0 = arith.constant 0 : i32
    %c0_i32_1 = arith.constant 0 : i32
    return %c0_i32, %c0_i32_0 : i32, i32
  }
  func.func @transform_2(%arg0: i32) -> (i32, i32) {
    %c0_i32 = arith.constant 0 : i32
    %c0_i32_0 = arith.constant 0 : i32
    %c0_i32_1 = arith.constant 0 : i32
    return %c0_i32, %c0_i32_0 : i32, i32
  }
  func.func @transform_3(%arg0: i32) -> (i32, i32) {
    %c0_i32 = arith.constant 0 : i32
    %c0_i32_0 = arith.constant 0 : i32
    return %c0_i32, %arg0 : i32, i32
  }
}

</mosaic_0001>

<llo_original>
// kernel: tpu_custom_call.1
$region0: #{tpu_custom_call.1}
  #allocation0 [shape = 'u32[]', space=smem, size = 0x4, offset = 0x4, fixed_abs, tag = 'smem constant byte address 0x4 - core index']
  #allocation1 [shape = 'u32[144,128]{1,0:T(1,128)}', space=vmem, size = 0x12000, scoped, tag = 'internal scratch']
  %s0 = inlined_call_operand.vmem [shape: f32[8,32], index: 0, kind: input, shape index: {}]
  %s1 = inlined_call_operand.hbm [shape: f32[8,32], index: 1, kind: input, shape index: {}]
  %s2 = inlined_call_operand.vmem [shape: f32[8,1], index: 2, kind: input, shape index: {}]
  %s3 = inlined_call_operand.hbm [shape: f32[8,8], index: 3, kind: output, shape index: {}]
  %s4 = sld [smem:[#allocation0]]
  $region26: #{tpu_custom_call.1} parent=0
    _
  %s6 = ssub.s32 1, %s4
  %s7 = scalar_select 0, %s6, %s4
  $region1: #{tpu_custom_call.1} parent=0
    #allocation2 [shape = 'u8[4096]{0}', space=vmem, size = 0x1000, scoped, tag = 'input window, operand 1, single buffered']
    #allocation3 [shape = 's32[1]{0}', space=sflag, size = 0x4, scoped, tag = 'scoped memory for tpu_custom_call.1']
    #allocation4 [shape = 's32[1]{0}', space=sflag, size = 0x4, scoped, tag = 'scoped memory for tpu_custom_call.1']
    #allocation5 [shape = 'u8[4096]{0}', space=vmem, size = 0x1000, scoped, tag = 'output window, operand 0, single buffered']
    %8 = vsyncpa [#allocation3], 0
    %9 = vsyncpa [#allocation4], 0
    // Predicated region
    $region2: #{tpu_custom_call.1} parent=1 // pred_check
      _
    $region3: #{tpu_custom_call.1} parent=1 // pred_check_branch
      %11 = sbr.rel (0) target = $region5
    $region4: #{tpu_custom_call.1} parent=1 // pred_region
      _
    $region5: #{tpu_custom_call.1} parent=1 // pred_fallthru
      _
    // Predicated region
    $region6: #{tpu_custom_call.1} parent=1 // pred_check
      _
    $region7: #{tpu_custom_call.1} parent=1 // pred_check_branch
      %13 = sbr.rel (0) target = $region9
    $region8: #{tpu_custom_call.1} parent=1 // pred_region
      %s15 = ssub.s32 128, 128
      %16 = vsyncadd [#allocation3], %s15
      %s18 = sshll.u32 [#allocation2], 4
      %s19 = int_to_ptr.vmem [resolvable:$true] %s18
      %21 = dma.hbm_to_vmem [thread:$0]  %s1, 128, %s19, [#allocation3]
    $region9: #{tpu_custom_call.1} parent=1 // pred_fallthru
      _
    // Predicated region
    $region10: #{tpu_custom_call.1} parent=1 // pred_check
      _
    $region11: #{tpu_custom_call.1} parent=1 // pred_check_branch
      %23 = sbr.rel (0) target = $region13
    $region12: #{tpu_custom_call.1} parent=1 // pred_region
      _
    $region13: #{tpu_custom_call.1} parent=1 // pred_fallthru
      _
    // Predicated region
    $region14: #{tpu_custom_call.1} parent=1 // pred_check
      _
    $region15: #{tpu_custom_call.1} parent=1 // pred_check_branch
      %25 = sbr.rel (0) target = $region17
    $region16: #{tpu_custom_call.1} parent=1 // pred_region
      %26 = dma.done [#allocation3], 128
    $region17: #{tpu_custom_call.1} parent=1 // pred_fallthru
      _
    %v27 = vld [vmem:[#allocation2] sm:$0xff]
    %v28 = vld [vmem:[%s0] sm:$0xff]
    %v29 = vld [vmem:[%s2] sm:$0xff]
    %31 = vset.pattern.permute.xlu0 0
    %32 = vperm.xlu0 %31, %v29
    %v33 = vpop.permute.xlu0 %32
    %vm35 = vcmask 261120
    %v37 = vsel %vm35, %v27, 0
    %v40 = vsel %vm35, %v28, 0
    %42 = vmatprep.subr.mxu0 0.0
    %43 = vmatpush1.xpose.msra.mxu0 0.0
    %44 = vmatprep.subr.mxu0 0.0
    %45 = vmatpush1.xpose.msra.mxu0 0.0
    %46 = vmatprep.subr.mxu0 0.0
    %47 = vmatpush1.xpose.msra.mxu0 0.0
    %48 = vmatprep.subr.mxu0 0.0
    %49 = vmatpush1.xpose.msra.mxu0 0.0
    %50 = vmatprep.subr.mxu0 0.0
    %51 = vmatpush1.xpose.msra.mxu0 0.0
    %52 = vmatprep.subr.mxu0 0.0
    %53 = vmatpush1.xpose.msra.mxu0 0.0
    %54 = vmatprep.subr.mxu0 0.0
    %55 = vmatpush1.xpose.msra.mxu0 0.0
    %56 = vmatprep.subr.mxu0 0.0
    %57 = vmatpush1.xpose.msra.mxu0 0.0
    %58 = vmatprep.subr.mxu0 0.0
    %59 = vmatpush1.xpose.msra.mxu0 0.0
    %60 = vmatprep.subr.mxu0 0.0
    %61 = vmatpush1.xpose.msra.mxu0 0.0
    %62 = vmatprep.subr.mxu0 0.0
    %63 = vmatpush1.xpose.msra.mxu0 0.0
    %64 = vmatprep.subr.mxu0 0.0
    %65 = vmatpush1.xpose.msra.mxu0 0.0
    %66 = vmatprep.subr.mxu0 0.0
    %67 = vmatpush1.xpose.msra.mxu0 0.0
    %68 = vmatprep.subr.mxu0 0.0
    %69 = vmatpush1.xpose.msra.mxu0 0.0
    %70 = vmatprep.subr.mxu0 0.0
    %71 = vmatpush1.xpose.msra.mxu0 0.0
    %72 = vmatprep.subr.mxu0 0.0
    %73 = vmatpush1.xpose.msra.mxu0 %v40
    %74 = vmatprep.subr.mxu0 0.0
    %75 = vmatpush2.xpose.msra.mxu0 0.0
    %76 = vmatprep.subr.mxu0 0.0
    %77 = vmatpush2.xpose.msra.mxu0 0.0
    %78 = vmatprep.subr.mxu0 0.0
    %79 = vmatpush2.xpose.msra.mxu0 0.0
    %80 = vmatprep.subr.mxu0 0.0
    %81 = vmatpush2.xpose.msra.mxu0 0.0
    %82 = vmatprep.subr.mxu0 0.0
    %83 = vmatpush2.xpose.msra.mxu0 0.0
    %84 = vmatprep.subr.mxu0 0.0
    %85 = vmatpush2.xpose.msra.mxu0 0.0
    %86 = vmatprep.subr.mxu0 0.0
    %87 = vmatpush2.xpose.msra.mxu0 0.0
    %88 = vmatprep.subr.mxu0 0.0
    %89 = vmatpush2.xpose.msra.mxu0 0.0
    %90 = vmatprep.subr.mxu0 0.0
    %91 = vmatpush2.xpose.msra.mxu0 0.0
    %92 = vmatprep.subr.mxu0 0.0
    %93 = vmatpush2.xpose.msra.mxu0 0.0
    %94 = vmatprep.subr.mxu0 0.0
    %95 = vmatpush2.xpose.msra.mxu0 0.0
    %96 = vmatprep.subr.mxu0 0.0
    %97 = vmatpush2.xpose.msra.mxu0 0.0
    %98 = vmatprep.subr.mxu0 0.0
    %99 = vmatpush2.xpose.msra.mxu0 0.0
    %100 = vmatprep.subr.mxu0 0.0
    %101 = vmatpush2.xpose.msra.mxu0 0.0
    %102 = vmatprep.subr.mxu0 0.0
    %103 = vmatpush2.xpose.msra.mxu0 0.0
    %104 = vmatprep.subr.mxu0 0.0
    %105 = vmatpush2.xpose.msra.mxu0 0.0
    %106 = vmatprep.mubr.f32.mxu0 0.0
    %107 = vmatmul.mubr.f32.gmra.mxu0 %v37
    %v108 = vpop.f32.mrf.mxu0
    %v109 = vadd.f32 %v33, %v108
    %v110 = vpop.f32.mrf.mxu0
    %111 = vdwg.mxu0
    %vm112 = vcmask 64512
    %113 = vst.msk [vmem:[#allocation5] sm:$0xff] %vm112, %v109
    // Predicated region
    $region18: #{tpu_custom_call.1} parent=1 // pred_check
      _
    $region19: #{tpu_custom_call.1} parent=1 // pred_check_branch
      %115 = sbr.rel (0) target = $region21
    $region20: #{tpu_custom_call.1} parent=1 // pred_region
      %s117 = ssub.s32 128, 128
      %118 = vsyncadd [#allocation4], %s117
      %s120 = sshll.u32 [#allocation5], 4
      %s121 = int_to_ptr.vmem [resolvable:$true] %s120
      %123 = dma.vmem_to_hbm [thread:$0]  %s121, 128, %s3, [#allocation4]
    $region21: #{tpu_custom_call.1} parent=1 // pred_fallthru
      _
    // Predicated region
    $region22: #{tpu_custom_call.1} parent=1 // pred_check
      _
    $region23: #{tpu_custom_call.1} parent=1 // pred_check_branch
      %125 = sbr.rel (0) target = $region25
    $region24: #{tpu_custom_call.1} parent=1 // pred_region
      %126 = dma.done [#allocation4], 128
    $region25: #{tpu_custom_call.1} parent=1 // pred_fallthru
      _
    %127 = vsyncpa [#allocation3], 1
    %128 = vsyncpa [#allocation4], 1

</llo_original>
